<compile_context>
chip_gen: v5e
topology: v5e:2x2
jax: 0.10.0
libtpu: 0.0.40
codegen_flags: <defaults>
</compile_context>

<pallas_src>
import jax
import jax.numpy as jnp
import numpy as np
from jax.experimental import pallas as pl
from jax.experimental.pallas import tpu as pltpu


def _softplus(x):
    # Matches torch.nn.functional.softplus (beta=1, threshold=20)
    return jnp.where(x > 20.0, x, jnp.log1p(jnp.exp(jnp.minimum(x, 20.0))))


def _vmem_limit_bytes():
    """~82% of physical VMEM: ~52 MiB on v7x (64 MiB), ~105 MiB on v5e/v6e (128 MiB)."""
    cap = 128 * 1024 * 1024
    try:
        info = pltpu.get_tpu_info()
        cap = int(getattr(info, "vmem_capacity_bytes", cap) or cap)
    except Exception:
        pass
    return int(cap * 0.82)


def _build_halo(x_pad, w1_c, b1, tl, nt, cdt):
    """Pre-project the conv halo rows (LayerNorm + @W_in1) in plain JAX.

    halo[b, i, 0] = projected x[b, i*tl - 1]   (zero for i == 0: global left edge)
    halo[b, i, 1] = projected x[b, (i+1)*tl]   (zero for i == nt-1: global right edge)
    Edge rows are zeroed AFTER projection, matching Conv1d's zero padding exactly.
    """
    B, _, _ = x_pad.shape
    di = w1_c.shape[1]
    if nt == 1:
        return jnp.zeros((B, 1, 2, di), jnp.float32)
    prev_idx = jnp.arange(1, nt) * tl - 1       # sources for tiles 1..nt-1
    next_idx = jnp.arange(1, nt) * tl           # sources for tiles 0..nt-2
    rows = jnp.concatenate([jnp.take(x_pad, prev_idx, axis=1),
                            jnp.take(x_pad, next_idx, axis=1)], axis=1)
    rows = rows.astype(jnp.float32)             # (B, 2*(nt-1), D)
    m = jnp.mean(rows, axis=-1, keepdims=True)
    v = jnp.mean((rows - m) ** 2, axis=-1, keepdims=True)
    xhat = (rows - m) * jax.lax.rsqrt(v + 1e-5)
    proj = jnp.dot(xhat.astype(cdt), w1_c,
                   preferred_element_type=jnp.float32) + b1      # (B, 2*(nt-1), di)
    zeros = jnp.zeros((B, 1, di), jnp.float32)
    prev_all = jnp.concatenate([zeros, proj[:, :nt - 1]], axis=1)   # (B, nt, di)
    next_all = jnp.concatenate([proj[:, nt - 1:], zeros], axis=1)   # (B, nt, di)
    return jnp.stack([prev_all, next_all], axis=2)                  # (B, nt, 2, di)


def stateful_mamba_block(x, params, seq_tile=512, matmul_dtype=jnp.bfloat16):
    B, L, D = x.shape
    di = params["w_dt"].shape[0]
    f32 = jnp.float32
    cdt = matmul_dtype

    # ---- wrapper-side weight prep: fold LN affine + layer_scale, cast to bf16 ----
    g_col = params["ln_g"].astype(f32).reshape(D, 1)          # gamma -> W_in rows
    b_row = params["ln_b"].astype(f32).reshape(1, D)          # beta  -> in_proj bias
    w1_f = params["w_in1"].astype(f32) * g_col
    w2_f = params["w_in2"].astype(f32) * g_col
    b1 = b_row @ params["w_in1"].astype(f32)                  # (1, di)
    b2 = b_row @ params["w_in2"].astype(f32)                  # (1, di)
    w_out_f = params["w_out"].astype(f32) * params["scale"].astype(f32).reshape(1, D)

    w1 = w1_f.astype(cdt)
    w2 = w2_f.astype(cdt)
    w_dt = params["w_dt"].astype(cdt)
    w_out = w_out_f.astype(cdt)
    b_dt = params["b_dt"].astype(f32)
    conv_w = params["conv_w"].astype(f32)

    # ---- sequence tiling: pad L up to a tile multiple (keeps pipelining alive) ----
    tl = max(1, min(seq_tile, L))
    nt = -(-L // tl)
    L_pad = nt * tl
    needs_tail_mask = L_pad != L
    x_pad = x if not needs_tail_mask else jnp.pad(x, ((0, 0), (0, L_pad - L), (0, 0)))

    halo = _build_halo(x_pad, w1, b1, tl, nt, cdt)             # (B, nt, 2, di) f32

    TL = tl

    def kernel(x_ref, halo_ref, w1_ref, b1_ref, w2_ref, b2_ref, conv_w_ref,
               w_dt_ref, b_dt_ref, w_out_ref, o_ref):
        # --- LayerNorm stats in f32; gamma/beta already folded into W_in / bias ---
        xt = x_ref[...].astype(jnp.float32)                             # (TL, D)
        m = jnp.mean(xt, axis=-1, keepdims=True)
        c = xt - m
        var = jnp.mean(c * c, axis=-1, keepdims=True)
        xhat = (c * jax.lax.rsqrt(var + 1e-5)).astype(cdt)

        # --- in_proj: two back-to-back MXU dots (bf16 operands, f32 accumulate) ---
        x1 = jnp.dot(xhat, w1_ref[...],
                     preferred_element_type=jnp.float32) + b1_ref[...]  # (TL, di)
        x2 = jnp.dot(xhat, w2_ref[...],
                     preferred_element_type=jnp.float32) + b2_ref[...]  # (TL, di)

        if needs_tail_mask:
            # Zero x1 on rows beyond the true sequence end so the depthwise conv
            # sees the same zero padding as Conv1d on the unpadded sequence.
            li = pl.program_id(1)
            grow = li * TL + jax.lax.broadcasted_iota(jnp.int32, (TL, 1), 0)
            x1 = jnp.where(grow < L, x1, 0.0)

        # --- depthwise Conv1d(kernel=3, padding=1, groups=d_inner, no bias) ---
        # Interior rows from two rolls; rows 0 / TL-1 patched with pre-projected halo.
        halo_rows = halo_ref[...]                                       # (2, di)
        row = jax.lax.broadcasted_iota(jnp.int32, (TL, 1), 0)
        x_prev = jnp.where(row == 0, halo_rows[0:1, :],
                           pltpu.roll(x1, shift=1, axis=0))
        x_next = jnp.where(row == TL - 1, halo_rows[1:2, :],
                           pltpu.roll(x1, shift=TL - 1, axis=0))        # roll by -1
        cw = conv_w_ref[...]                                            # (3, di)
        x1_conv = x_prev * cw[0:1, :] + x1 * cw[1:2, :] + x_next * cw[2:3, :]

        # --- SiLU (f32 VPU/EUP) ---
        x1_ssm = x1_conv * jax.nn.sigmoid(x1_conv)

        # --- dt_proj, then sigmoid(softplus(t)) fused as 1 - 1/(2 + e^t) ---
        dt_raw = jnp.dot(x1_ssm.astype(cdt), w_dt_ref[...],
                         preferred_element_type=jnp.float32) + b_dt_ref[...]
        e = jnp.exp(jnp.minimum(dt_raw, 20.0))
        dt_gate = 1.0 - pl.reciprocal(2.0 + e, approx=True)             # EUP slot

        # --- gating ---
        x_gated = (x1_ssm * dt_gate) * jax.nn.sigmoid(x2)

        # --- out_proj (layer_scale folded into W_out), residual add ---
        out = jnp.dot(x_gated.astype(cdt), w_out_ref[...],
                      preferred_element_type=jnp.float32)
        o_ref[...] = (out + xt).astype(o_ref.dtype)

    def wspec(shape):
        # Grid-invariant block: single-buffer it (no pointless double-buffering).
        n = len(shape)
        return pl.BlockSpec(shape, lambda b, i: (0,) * n,
                            pipeline_mode=pl.Buffered(1))

    out = pl.pallas_call(
        kernel,
        out_shape=jax.ShapeDtypeStruct((B, L_pad, D), x.dtype),
        grid=(B, nt),
        in_specs=[
            pl.BlockSpec((None, TL, D), lambda b, i: (b, i, 0)),          # x tile
            pl.BlockSpec((None, None, 2, di), lambda b, i: (b, i, 0, 0)), # halo rows
            wspec((D, di)),           # W_in1 (gamma folded)
            wspec((1, di)),           # in_proj bias 1 (beta folded)
            wspec((D, di)),           # W_in2 (gamma folded)
            wspec((1, di)),           # in_proj bias 2 (beta folded)
            wspec((3, di)),           # depthwise conv weights
            wspec((di, di)),          # W_dt
            wspec((1, di)),           # b_dt
            wspec((di, D)),           # W_out (layer_scale folded)
        ],
        out_specs=pl.BlockSpec((None, TL, D), lambda b, i: (b, i, 0)),
        compiler_params=pltpu.CompilerParams(
            dimension_semantics=("parallel", "parallel"),
            vmem_limit_bytes=_vmem_limit_bytes()),
    )(x_pad, halo, w1, b1, w2, b2, conv_w, w_dt, b_dt, w_out)

    return out if not needs_tail_mask else out[:, :L, :]


def reference_forward(x, p):
    """Pure-JAX reference mirroring the PyTorch forward (default flags, eval)."""
    residual = x
    mean = jnp.mean(x, axis=-1, keepdims=True)
    var = jnp.mean((x - mean) ** 2, axis=-1, keepdims=True)
    xn = (x - mean) / jnp.sqrt(var + 1e-5) * p["ln_g"] + p["ln_b"]
    x1 = xn @ p["w_in1"]
    x2 = xn @ p["w_in2"]
    x1p = jnp.pad(x1, ((0, 0), (1, 1), (0, 0)))
    x1_conv = (x1p[:, :-2] * p["conv_w"][0] + x1p[:, 1:-1] * p["conv_w"][1]
               + x1p[:, 2:] * p["conv_w"][2])
    x1_ssm = x1_conv * jax.nn.sigmoid(x1_conv)
    dt = _softplus(x1_ssm @ p["w_dt"] + p["b_dt"])
    xg = (x1_ssm * jax.nn.sigmoid(dt)) * jax.nn.sigmoid(x2)
    out = (xg @ p["w_out"]) * p["scale"]
    return out + residual


def make_params(key, d_model, expand_factor=1.5):
    d_inner = int(d_model * expand_factor)
    ks = jax.random.split(key, 8)
    s_in = 1.0 / np.sqrt(d_model)
    s_inner = 1.0 / np.sqrt(d_inner)
    return {
        # Non-trivial gamma/beta so the LN-affine folding path is actually exercised.
        "ln_g": 1.0 + 0.1 * jax.random.normal(ks[6], (1, d_model), jnp.float32),
        "ln_b": 0.1 * jax.random.normal(ks[7], (1, d_model), jnp.float32),
        "w_in1": jax.random.uniform(ks[0], (d_model, d_inner), jnp.float32,
                                    -s_in, s_in),
        "w_in2": jax.random.uniform(ks[1], (d_model, d_inner), jnp.float32,
                                    -s_in, s_in),
        "conv_w": jax.random.uniform(ks[2], (3, d_inner), jnp.float32,
                                     -1.0 / np.sqrt(3.0), 1.0 / np.sqrt(3.0)),
        "w_dt": jax.random.uniform(ks[3], (d_inner, d_inner), jnp.float32,
                                   -s_inner, s_inner),
        "b_dt": jax.random.uniform(ks[4], (1, d_inner), jnp.float32,
                                   -s_inner, s_inner),
        "w_out": jax.random.uniform(ks[5], (d_inner, d_model), jnp.float32,
                                    -s_inner, s_inner),
        "scale": jnp.full((1, d_model), 0.1, jnp.float32),
    }


if __name__ == "__main__":
    B, L, D = 2, 16, 32          # batch, sequence, d_model ; d_inner = 48
    key = jax.random.PRNGKey(0)
    kx, kp = jax.random.split(key)
    x = jax.random.normal(kx, (B, L, D), jnp.float32)
    params = make_params(kp, D, expand_factor=1.5)
    ref = reference_forward(x, params)

    # Default bf16-MXU path; seq_tile=8 -> 2 sequence tiles, exercising the halo path.
    out_bf16 = jax.block_until_ready(stateful_mamba_block(x, params, seq_tile=8))
    np.testing.assert_allclose(np.asarray(out_bf16), np.asarray(ref),
                               rtol=2e-2, atol=2e-2)

    # f32-MXU path, tighter tolerance (approx reciprocal in the gate ~ few e-4).
    out_f32 = jax.block_until_ready(
        stateful_mamba_block(x, params, seq_tile=8, matmul_dtype=jnp.float32))
    np.testing.assert_allclose(np.asarray(out_f32), np.asarray(ref),
                               rtol=2e-3, atol=2e-3)

    # Sequence length not a multiple of the tile -> pad + in-kernel tail-mask path.
    x_odd = x[:, :13, :]
    ref_odd = reference_forward(x_odd, params)
    out_odd = jax.block_until_ready(
        stateful_mamba_block(x_odd, params, seq_tile=8, matmul_dtype=jnp.float32))
    np.testing.assert_allclose(np.asarray(out_odd), np.asarray(ref_odd),
                               rtol=2e-3, atol=2e-3)

    print("KERNEL_OK")
</pallas_src>

<mosaic_0001>
module attributes {stable_mosaic.version = 11 : i64} {
  func.func @kernel(%arg0: i32, %arg1: i32, %arg2: memref<1x8x32xf32, #tpu.memory_space<vmem>>, %arg3: memref<1x1x2x48xf32, #tpu.memory_space<vmem>>, %arg4: memref<32x48xbf16, #tpu.memory_space<vmem>>, %arg5: memref<1x48xf32, #tpu.memory_space<vmem>>, %arg6: memref<32x48xbf16, #tpu.memory_space<vmem>>, %arg7: memref<1x48xf32, #tpu.memory_space<vmem>>, %arg8: memref<3x48xf32, #tpu.memory_space<vmem>>, %arg9: memref<48x48xbf16, #tpu.memory_space<vmem>>, %arg10: memref<1x48xf32, #tpu.memory_space<vmem>>, %arg11: memref<48x32xbf16, #tpu.memory_space<vmem>>, %arg12: memref<1x8x32xf32, #tpu.memory_space<vmem>>) attributes {dimension_semantics = [#tpu.dimension_semantics<parallel>, #tpu.dimension_semantics<parallel>], iteration_bounds = array<i64: 2, 2>, scalar_prefetch = 0 : i64, scratch_operands = 0 : i64, tpu.core_type = #tpu.core_type<tc>, window_params = [{transform_indices = @transform_0, window_bounds = array<i64: 1, 8, 32>}, {transform_indices = @transform_1, window_bounds = array<i64: 1, 1, 2, 48>}, {pipeline_mode = #tpu.pipeline_mode<synchronous>, transform_indices = @transform_2, window_bounds = array<i64: 32, 48>}, {pipeline_mode = #tpu.pipeline_mode<synchronous>, transform_indices = @transform_3, window_bounds = array<i64: 1, 48>}, {pipeline_mode = #tpu.pipeline_mode<synchronous>, transform_indices = @transform_4, window_bounds = array<i64: 32, 48>}, {pipeline_mode = #tpu.pipeline_mode<synchronous>, transform_indices = @transform_5, window_bounds = array<i64: 1, 48>}, {pipeline_mode = #tpu.pipeline_mode<synchronous>, transform_indices = @transform_6, window_bounds = array<i64: 3, 48>}, {pipeline_mode = #tpu.pipeline_mode<synchronous>, transform_indices = @transform_7, window_bounds = array<i64: 48, 48>}, {pipeline_mode = #tpu.pipeline_mode<synchronous>, transform_indices = @transform_8, window_bounds = array<i64: 1, 48>}, {pipeline_mode = #tpu.pipeline_mode<synchronous>, transform_indices = @transform_9, window_bounds = array<i64: 48, 32>}, {transform_indices = @transform_10, window_bounds = array<i64: 1, 8, 32>}]} {
    %c0 = arith.constant 0 : index
    %c0_0 = arith.constant 0 : index
    %c0_1 = arith.constant 0 : index
    %0 = vector.load %arg2[%c0, %c0_0, %c0_1] : memref<1x8x32xf32, #tpu.memory_space<vmem>>, vector<1x8x32xf32>
    %1 = vector.shape_cast %0 : vector<1x8x32xf32> to vector<8x32xf32>
    %cst = arith.constant dense<0.000000e+00> : vector<8xf32>
    %2 = vector.multi_reduction <add>, %1, %cst [1] : vector<8x32xf32> to vector<8xf32>
    %3 = vector.shape_cast %2 : vector<8xf32> to vector<8x1xf32>
    %cst_2 = arith.constant 3.200000e+01 : f32
    %4 = vector.broadcast %cst_2 : f32 to vector<8x1xf32>
    %5 = arith.divf %3, %4 : vector<8x1xf32>
    %6 = vector.broadcast %5 : vector<8x1xf32> to vector<8x32xf32>
    %7 = arith.subf %1, %6 : vector<8x32xf32>
    %8 = arith.mulf %7, %7 : vector<8x32xf32>
    %cst_3 = arith.constant dense<0.000000e+00> : vector<8xf32>
    %9 = vector.multi_reduction <add>, %8, %cst_3 [1] : vector<8x32xf32> to vector<8xf32>
    %10 = vector.shape_cast %9 : vector<8xf32> to vector<8x1xf32>
    %cst_4 = arith.constant 3.200000e+01 : f32
    %11 = vector.broadcast %cst_4 : f32 to vector<8x1xf32>
    %12 = arith.divf %10, %11 : vector<8x1xf32>
    %cst_5 = arith.constant 9.99999974E-6 : f32
    %13 = vector.broadcast %cst_5 : f32 to vector<8x1xf32>
    %14 = arith.addf %12, %13 : vector<8x1xf32>
    %15 = math.rsqrt %14 : vector<8x1xf32>
    %16 = vector.broadcast %15 : vector<8x1xf32> to vector<8x32xf32>
    %17 = arith.mulf %7, %16 : vector<8x32xf32>
    %18 = arith.truncf %17 : vector<8x32xf32> to vector<8x32xbf16>
    %c0_6 = arith.constant 0 : index
    %c0_7 = arith.constant 0 : index
    %19 = vector.load %arg4[%c0_6, %c0_7] : memref<32x48xbf16, #tpu.memory_space<vmem>>, vector<32x48xbf16>
    %cst_8 = arith.constant dense<0.000000e+00> : vector<8x48xf32>
    %20 = tpu.matmul %18, %19, %cst_8 {dimension_numbers = #tpu.dot_dimension_numbers<[1], [0], [0], [1], [0, 0, 1, 1], [], []>} : vector<8x32xbf16>, vector<32x48xbf16>, vector<8x48xf32> -> vector<8x48xf32>
    %c0_9 = arith.constant 0 : index
    %c0_10 = arith.constant 0 : index
    %21 = vector.load %arg5[%c0_9, %c0_10] : memref<1x48xf32, #tpu.memory_space<vmem>>, vector<1x48xf32>
    %22 = vector.broadcast %21 : vector<1x48xf32> to vector<8x48xf32>
    %23 = arith.addf %20, %22 : vector<8x48xf32>
    %c0_11 = arith.constant 0 : index
    %c0_12 = arith.constant 0 : index
    %24 = vector.load %arg6[%c0_11, %c0_12] : memref<32x48xbf16, #tpu.memory_space<vmem>>, vector<32x48xbf16>
    %cst_13 = arith.constant dense<0.000000e+00> : vector<8x48xf32>
    %25 = tpu.matmul %18, %24, %cst_13 {dimension_numbers = #tpu.dot_dimension_numbers<[1], [0], [0], [1], [0, 0, 1, 1], [], []>} : vector<8x32xbf16>, vector<32x48xbf16>, vector<8x48xf32> -> vector<8x48xf32>
    %c0_14 = arith.constant 0 : index
    %c0_15 = arith.constant 0 : index
    %26 = vector.load %arg7[%c0_14, %c0_15] : memref<1x48xf32, #tpu.memory_space<vmem>>, vector<1x48xf32>
    %27 = vector.broadcast %26 : vector<1x48xf32> to vector<8x48xf32>
    %28 = arith.addf %25, %27 : vector<8x48xf32>
    %c0_16 = arith.constant 0 : index
    %c0_17 = arith.constant 0 : index
    %c0_18 = arith.constant 0 : index
    %c0_19 = arith.constant 0 : index
    %29 = vector.load %arg3[%c0_16, %c0_17, %c0_18, %c0_19] : memref<1x1x2x48xf32, #tpu.memory_space<vmem>>, vector<1x1x2x48xf32>
    %30 = vector.shape_cast %29 : vector<1x1x2x48xf32> to vector<2x48xf32>
    %31 = tpu.iota {dimensions = array<i32: 0>} : vector<8x1xi32>
    %c0_i32 = arith.constant 0 : i32
    %32 = vector.broadcast %c0_i32 : i32 to vector<8x1xi32>
    %33 = arith.cmpi eq, %31, %32 : vector<8x1xi32>
    %34 = vector.extract_strided_slice %30 {offsets = [0, 0], sizes = [1, 48], strides = [1, 1]} : vector<2x48xf32> to vector<1x48xf32>
    %c1_i32 = arith.constant 1 : i32
    %35 = tpu.dynamic_rotate %23 by %c1_i32 dim 0 : vector<8x48xf32>, i32 -> vector<8x48xf32>
    %36 = vector.shape_cast %33 : vector<8x1xi1> to vector<8x1xi1>
    %37 = vector.broadcast %36 : vector<8x1xi1> to vector<8x48xi1>
    %38 = vector.shape_cast %34 : vector<1x48xf32> to vector<1x48xf32>
    %39 = vector.broadcast %38 : vector<1x48xf32> to vector<8x48xf32>
    %40 = arith.select %37, %39, %35 : vector<8x48xi1>, vector<8x48xf32>
    %c7_i32 = arith.constant 7 : i32
    %41 = vector.broadcast %c7_i32 : i32 to vector<8x1xi32>
    %42 = arith.cmpi eq, %31, %41 : vector<8x1xi32>
    %43 = vector.extract_strided_slice %30 {offsets = [1, 0], sizes = [1, 48], strides = [1, 1]} : vector<2x48xf32> to vector<1x48xf32>
    %c7_i32_20 = arith.constant 7 : i32
    %44 = tpu.dynamic_rotate %23 by %c7_i32_20 dim 0 : vector<8x48xf32>, i32 -> vector<8x48xf32>
    %45 = vector.shape_cast %42 : vector<8x1xi1> to vector<8x1xi1>
    %46 = vector.broadcast %45 : vector<8x1xi1> to vector<8x48xi1>
    %47 = vector.shape_cast %43 : vector<1x48xf32> to vector<1x48xf32>
    %48 = vector.broadcast %47 : vector<1x48xf32> to vector<8x48xf32>
    %49 = arith.select %46, %48, %44 : vector<8x48xi1>, vector<8x48xf32>
    %c0_21 = arith.constant 0 : index
    %c0_22 = arith.constant 0 : index
    %50 = vector.load %arg8[%c0_21, %c0_22] : memref<3x48xf32, #tpu.memory_space<vmem>>, vector<3x48xf32>
    %51 = vector.extract_strided_slice %50 {offsets = [0, 0], sizes = [1, 48], strides = [1, 1]} : vector<3x48xf32> to vector<1x48xf32>
    %52 = vector.broadcast %51 : vector<1x48xf32> to vector<8x48xf32>
    %53 = arith.mulf %40, %52 : vector<8x48xf32>
    %54 = vector.extract_strided_slice %50 {offsets = [1, 0], sizes = [1, 48], strides = [1, 1]} : vector<3x48xf32> to vector<1x48xf32>
    %55 = vector.broadcast %54 : vector<1x48xf32> to vector<8x48xf32>
    %56 = arith.mulf %23, %55 : vector<8x48xf32>
    %57 = arith.addf %53, %56 : vector<8x48xf32>
    %58 = vector.extract_strided_slice %50 {offsets = [2, 0], sizes = [1, 48], strides = [1, 1]} : vector<3x48xf32> to vector<1x48xf32>
    %59 = vector.broadcast %58 : vector<1x48xf32> to vector<8x48xf32>
    %60 = arith.mulf %49, %59 : vector<8x48xf32>
    %61 = arith.addf %57, %60 : vector<8x48xf32>
    %62 = arith.negf %61 : vector<8x48xf32>
    %63 = math.exp %62 : vector<8x48xf32>
    %cst_23 = arith.constant 1.000000e+00 : f32
    %64 = vector.broadcast %cst_23 : f32 to vector<8x48xf32>
    %65 = arith.addf %64, %63 : vector<8x48xf32>
    %66 = arith.divf %64, %65 : vector<8x48xf32>
    %67 = arith.mulf %61, %66 : vector<8x48xf32>
    %68 = arith.truncf %67 : vector<8x48xf32> to vector<8x48xbf16>
    %c0_24 = arith.constant 0 : index
    %c0_25 = arith.constant 0 : index
    %69 = vector.load %arg9[%c0_24, %c0_25] : memref<48x48xbf16, #tpu.memory_space<vmem>>, vector<48x48xbf16>
    %cst_26 = arith.constant dense<0.000000e+00> : vector<8x48xf32>
    %70 = tpu.matmul %68, %69, %cst_26 {dimension_numbers = #tpu.dot_dimension_numbers<[1], [0], [0], [1], [0, 0, 1, 1], [], []>} : vector<8x48xbf16>, vector<48x48xbf16>, vector<8x48xf32> -> vector<8x48xf32>
    %c0_27 = arith.constant 0 : index
    %c0_28 = arith.constant 0 : index
    %71 = vector.load %arg10[%c0_27, %c0_28] : memref<1x48xf32, #tpu.memory_space<vmem>>, vector<1x48xf32>
    %72 = vector.broadcast %71 : vector<1x48xf32> to vector<8x48xf32>
    %73 = arith.addf %70, %72 : vector<8x48xf32>
    %cst_29 = arith.constant 2.000000e+01 : f32
    %74 = vector.broadcast %cst_29 : f32 to vector<8x48xf32>
    %75 = arith.minimumf %73, %74 : vector<8x48xf32>
    %76 = math.exp %75 : vector<8x48xf32>
    %cst_30 = arith.constant 2.000000e+00 : f32
    %77 = vector.broadcast %cst_30 : f32 to vector<8x48xf32>
    %78 = arith.addf %77, %76 : vector<8x48xf32>
    %79 = tpu.reciprocal %78 {approx = true} : vector<8x48xf32> -> vector<8x48xf32>
    %cst_31 = arith.constant 1.000000e+00 : f32
    %80 = vector.broadcast %cst_31 : f32 to vector<8x48xf32>
    %81 = arith.subf %80, %79 : vector<8x48xf32>
    %82 = arith.mulf %67, %81 : vector<8x48xf32>
    %83 = arith.negf %28 : vector<8x48xf32>
    %84 = math.exp %83 : vector<8x48xf32>
    %cst_32 = arith.constant 1.000000e+00 : f32
    %85 = vector.broadcast %cst_32 : f32 to vector<8x48xf32>
    %86 = arith.addf %85, %84 : vector<8x48xf32>
    %87 = arith.divf %85, %86 : vector<8x48xf32>
    %88 = arith.mulf %82, %87 : vector<8x48xf32>
    %89 = arith.truncf %88 : vector<8x48xf32> to vector<8x48xbf16>
    %c0_33 = arith.constant 0 : index
    %c0_34 = arith.constant 0 : index
    %90 = vector.load %arg11[%c0_33, %c0_34] : memref<48x32xbf16, #tpu.memory_space<vmem>>, vector<48x32xbf16>
    %cst_35 = arith.constant dense<0.000000e+00> : vector<8x32xf32>
    %91 = tpu.matmul %89, %90, %cst_35 {dimension_numbers = #tpu.dot_dimension_numbers<[1], [0], [0], [1], [0, 0, 1, 1], [], []>} : vector<8x48xbf16>, vector<48x32xbf16>, vector<8x32xf32> -> vector<8x32xf32>
    %92 = arith.addf %91, %1 : vector<8x32xf32>
    %c0_36 = arith.constant 0 : index
    %c0_37 = arith.constant 0 : index
    %c0_38 = arith.constant 0 : index
    %93 = vector.load %arg12[%c0_36, %c0_37, %c0_38] : memref<1x8x32xf32, #tpu.memory_space<vmem>>, vector<1x8x32xf32>
    %94 = vector.shape_cast %93 : vector<1x8x32xf32> to vector<8x32xf32>
    %95 = vector.shape_cast %92 : vector<8x32xf32> to vector<1x8x32xf32>
    tpu.vector_store %arg12[%c0_36, %c0_37, %c0_38], %95 {strides = array<i32>} : memref<1x8x32xf32, #tpu.memory_space<vmem>>, vector<1x8x32xf32>,
    return
  }
  func.func @transform_0(%arg0: i32, %arg1: i32) -> (i32, i32, i32) {
    %c0_i32 = arith.constant 0 : i32
    %c0_i32_0 = arith.constant 0 : i32
    return %arg0, %arg1, %c0_i32 : i32, i32, i32
  }
  func.func @transform_1(%arg0: i32, %arg1: i32) -> (i32, i32, i32, i32) {
    %c0_i32 = arith.constant 0 : i32
    %c0_i32_0 = arith.constant 0 : i32
    %c0_i32_1 = arith.constant 0 : i32
    return %arg0, %arg1, %c0_i32, %c0_i32_0 : i32, i32, i32, i32
  }
  func.func @transform_2(%arg0: i32, %arg1: i32) -> (i32, i32) {
    %c0_i32 = arith.constant 0 : i32
    %c0_i32_0 = arith.constant 0 : i32
    %c0_i32_1 = arith.constant 0 : i32
    return %c0_i32, %c0_i32_0 : i32, i32
  }
  func.func @transform_3(%arg0: i32, %arg1: i32) -> (i32, i32) {
    %c0_i32 = arith.constant 0 : i32
    %c0_i32_0 = arith.constant 0 : i32
    %c0_i32_1 = arith.constant 0 : i32
    return %c0_i32, %c0_i32_0 : i32, i32
  }
  func.func @transform_4(%arg0: i32, %arg1: i32) -> (i32, i32) {
    %c0_i32 = arith.constant 0 : i32
    %c0_i32_0 = arith.constant 0 : i32
    %c0_i32_1 = arith.constant 0 : i32
    return %c0_i32, %c0_i32_0 : i32, i32
  }
  func.func @transform_5(%arg0: i32, %arg1: i32) -> (i32, i32) {
    %c0_i32 = arith.constant 0 : i32
    %c0_i32_0 = arith.constant 0 : i32
    %c0_i32_1 = arith.constant 0 : i32
    return %c0_i32, %c0_i32_0 : i32, i32
  }
  func.func @transform_6(%arg0: i32, %arg1: i32) -> (i32, i32) {
    %c0_i32 = arith.constant 0 : i32
    %c0_i32_0 = arith.constant 0 : i32
    %c0_i32_1 = arith.constant 0 : i32
    return %c0_i32, %c0_i32_0 : i32, i32
  }
  func.func @transform_7(%arg0: i32, %arg1: i32) -> (i32, i32) {
    %c0_i32 = arith.constant 0 : i32
    %c0_i32_0 = arith.constant 0 : i32
    %c0_i32_1 = arith.constant 0 : i32
    return %c0_i32, %c0_i32_0 : i32, i32
  }
  func.func @transform_8(%arg0: i32, %arg1: i32) -> (i32, i32) {
    %c0_i32 = arith.constant 0 : i32
    %c0_i32_0 = arith.constant 0 : i32
    %c0_i32_1 = arith.constant 0 : i32
    return %c0_i32, %c0_i32_0 : i32, i32
  }
  func.func @transform_9(%arg0: i32, %arg1: i32) -> (i32, i32) {
    %c0_i32 = arith.constant 0 : i32
    %c0_i32_0 = arith.constant 0 : i32
    %c0_i32_1 = arith.constant 0 : i32
    return %c0_i32, %c0_i32_0 : i32, i32
  }
  func.func @transform_10(%arg0: i32, %arg1: i32) -> (i32, i32, i32) {
    %c0_i32 = arith.constant 0 : i32
    %c0_i32_0 = arith.constant 0 : i32
    return %arg0, %arg1, %c0_i32 : i32, i32, i32
  }
}

</mosaic_0001>

<llo_original>
// kernel: tpu_custom_call.1
$region0: #{tpu_custom_call.1}
  #allocation0 [shape = 'u32[]', space=smem, size = 0x4, offset = 0x4, fixed_abs, tag = 'smem constant byte address 0x4 - core index']
  #allocation1 [shape = 'u32[72,128]{1,0:T(1,128)}', space=vmem, size = 0x9000, scoped, tag = 'internal scratch']
  %s0 = inlined_call_operand.vmem [shape: f32[2,16,32], index: 0, kind: input, shape index: {}]
  %s1 = inlined_call_operand.vmem [shape: f32[2,2,2,48], index: 1, kind: input, shape index: {}]
  %s2 = inlined_call_operand.hbm [shape: bf16[32,48], index: 2, kind: input, shape index: {}]
  %s3 = inlined_call_operand.hbm [shape: f32[1,48], index: 3, kind: input, shape index: {}]
  %s4 = inlined_call_operand.hbm [shape: bf16[32,48], index: 4, kind: input, shape index: {}]
  %s5 = inlined_call_operand.hbm [shape: f32[1,48], index: 5, kind: input, shape index: {}]
  %s6 = inlined_call_operand.vmem [shape: f32[3,48], index: 6, kind: input, shape index: {}]
  %s7 = inlined_call_operand.hbm [shape: bf16[48,48], index: 7, kind: input, shape index: {}]
  %s8 = inlined_call_operand.vmem [shape: f32[1,48], index: 8, kind: input, shape index: {}]
  %s9 = inlined_call_operand.vmem [shape: bf16[48,32], index: 9, kind: input, shape index: {}]
  %s10 = inlined_call_operand.hbm [shape: f32[2,16,32], index: 10, kind: output, shape index: {}]
  %s11 = sld [smem:[#allocation0]]
  $region93: #{tpu_custom_call.1} parent=0
    _
  %s13 = ssub.s32 1, %s11
  %s14 = scalar_select 0, %s13, %s11
  $region1: #{tpu_custom_call.1} parent=0
    #allocation2 [shape = 'u8[8192]{0}', space=vmem, size = 0x2000, scoped, tag = 'input window, operand 2, single buffered']
    #allocation3 [shape = 's32[2]{0}', space=sflag, size = 0x8, scoped, tag = 'scoped memory for tpu_custom_call.1']
    #allocation4 [shape = 's32[2]{0}', space=sflag, size = 0x8, scoped, tag = 'scoped memory for tpu_custom_call.1']
    #allocation5 [shape = 'u8[512]{0}', space=vmem, size = 0x400, scoped, tag = 'input window, operand 3, single buffered']
    #allocation6 [shape = 's32[1]{0}', space=sflag, size = 0x4, scoped, tag = 'scoped memory for tpu_custom_call.1']
    #allocation7 [shape = 'u8[8192]{0}', space=vmem, size = 0x2000, scoped, tag = 'input window, operand 4, single buffered']
    #allocation8 [shape = 'u8[512]{0}', space=vmem, size = 0x400, scoped, tag = 'input window, operand 5, single buffered']
    #allocation9 [shape = 's32[1]{0}', space=sflag, size = 0x4, scoped, tag = 'scoped memory for tpu_custom_call.1']
    #allocation10 [shape = 'u8[12288]{0}', space=vmem, size = 0x3000, scoped, tag = 'input window, operand 7, single buffered']
    #allocation11 [shape = 'u8[8192]{0}', space=vmem, size = 0x2000, scoped, tag = 'output window, operand 0']
    %15 = vsyncpa [#allocation3], 0
    %16 = vsyncpa [#allocation6], 0
    %17 = vsyncpa [#allocation9], 0
    %18 = vsyncpa [#allocation4], 0
    %s19 = scalar_lea.sflag [#allocation4], 1
    %20 = vsyncpa %s19, 0
    loop: start=0, step=1, limit=6
    $region2: #{tpu_custom_call.1} parent=1 // loop_pre_header
      _
    $region3: #{tpu_custom_call.1} parent=1 // loop_header
      %s22 = sphi 0, %s26
      %p23 = scmp.ge.s32.totalorder %s22, 6
      %s29 = sphi 0, %s41
      %s30 = sphi 0, %s37
      %s31 = sphi 0, %s29
      %s32 = sphi 0, %s30
      %s33 = sphi 0, %s31
      %s34 = sphi 0, %s32
      %s46 = sphi 0, %s48
      %s49 = sphi 0, %s46
      %s50 = sphi 0, %s49
      %s66 = sphi 0, %s50
      %s74 = sphi 0, %s76
      %s77 = sphi 0, %s74
      %s78 = sphi 0, %s77
      %s94 = sphi 0, %s78
      %s98 = sphi 0, %s98
      %s100 = sphi 0, %s98
      %s101 = sphi 0, %s100
      %s115 = sphi 0, %s101
      %s119 = sphi 0, %s119
      %s121 = sphi 0, %s119
      %s122 = sphi 0, %s121
      %s136 = sphi 0, %s122
      %s140 = sphi 0, %s140
      %s142 = sphi 0, %s140
      %s143 = sphi 0, %s142
      %s157 = sphi 0, %s143
      %s161 = sphi 0, %s161
      %s163 = sphi 0, %s161
      %s164 = sphi 0, %s163
      %s178 = sphi 0, %s164
      %s182 = sphi 0, %s182
      %s184 = sphi 0, %s182
      %s185 = sphi 0, %s184
      %s199 = sphi 0, %s185
      %s203 = sphi 0, %s203
      %s205 = sphi 0, %s203
      %s206 = sphi 0, %s205
      %s220 = sphi 0, %s206
      %s224 = sphi 0, %s224
      %s226 = sphi 0, %s224
      %s227 = sphi 0, %s226
      %s241 = sphi 0, %s227
      %s245 = sphi 0, %s245
      %s247 = sphi 0, %s245
      %s248 = sphi 0, %s247
      %s262 = sphi 0, %s248
      %s270 = sphi 0, %s272
      %s273 = sphi 0, %s270
      %s274 = sphi 0, %s273
      %s290 = sphi 0, %s274
    $region4: #{tpu_custom_call.1} parent=1 // loop_header_branch
      %25 = sbr.rel (%p23) target = $region8
    $region5: #{tpu_custom_call.1} parent=1 // loop_body
      %s27 = ssub.s32 %s22, 1
      %s28 = ssub.s32 %s22, 2
      %s35 = sadd.s32 1, %s30
      %p36 = scmp.ge.s32.totalorder %s35, 2
      %s37 = scalar_select %p36, 0, %s35
      %s38 = sadd.s32 1, %s29
      %s39 = scalar_select %p36, %s38, %s29
      %p40 = scmp.ge.s32.totalorder %s39, 2
      %s41 = scalar_select %p40, 0, %s39
      %s42 = ssub.s32 %s29, %s41
      %s43 = ssub.s32 %s30, %s37
      %s44 = sor.u32 %s42, %s43
      %p45 = scmp.eq.s32.totalorder %s44, 0
      %s47 = sadd.s32 %s46, 1
      %s48 = scalar_select %p45, %s46, %s47
      %p51 = pneg %p45
      %p52 = scmp.eq.s32.totalorder %s22, 3
      %p53 = por %p51, %p52
      %p54 = scmp.ne.s32.totalorder %s46, %s49
      %p55 = scmp.eq.s32.totalorder %s22, 0
      %p56 = por %p54, %p55
      %p57 = scmp.ne.s32.totalorder %s46, %s49
      %p58 = scmp.eq.s32.totalorder %s27, 3
      %p59 = por %p57, %p58
      %p60 = scmp.ne.s32.totalorder %s49, %s50
      %p61 = scmp.eq.s32.totalorder %s27, 0
      %p62 = por %p60, %p61
      %p63 = scmp.ne.s32.totalorder %s49, %s50
      %p64 = scmp.eq.s32.totalorder %s28, 3
      %p65 = por %p63, %p64
      %p67 = scmp.ne.s32.totalorder %s50, %s66
      %p68 = scmp.eq.s32.totalorder %s28, 0
      %p69 = por %p67, %p68
      %s70 = ssub.s32 %s29, %s41
      %s71 = ssub.s32 %s30, %s37
      %s72 = sor.u32 %s70, %s71
      %p73 = scmp.eq.s32.totalorder %s72, 0
      %s75 = sadd.s32 %s74, 1
      %s76 = scalar_select %p73, %s74, %s75
      %p79 = pneg %p73
      %p80 = scmp.eq.s32.totalorder %s22, 3
      %p81 = por %p79, %p80
      %p82 = scmp.ne.s32.totalorder %s74, %s77
      %p83 = scmp.eq.s32.totalorder %s22, 0
      %p84 = por %p82, %p83
      %p85 = scmp.ne.s32.totalorder %s74, %s77
      %p86 = scmp.eq.s32.totalorder %s27, 3
      %p87 = por %p85, %p86
      %p88 = scmp.ne.s32.totalorder %s77, %s78
      %p89 = scmp.eq.s32.totalorder %s27, 0
      %p90 = por %p88, %p89
      %p91 = scmp.ne.s32.totalorder %s77, %s78
      %p92 = scmp.eq.s32.totalorder %s28, 3
      %p93 = por %p91, %p92
      %p95 = scmp.ne.s32.totalorder %s78, %s94
      %p96 = scmp.eq.s32.totalorder %s28, 0
      %p97 = por %p95, %p96
      %s99 = sadd.s32 %s98, 1
      %p102 = scmp.eq.s32.totalorder %s22, 3
      %p103 = scmp.ne.s32.totalorder %s98, %s100
      %p104 = scmp.eq.s32.totalorder %s22, 0
      %p105 = por %p103, %p104
      %p106 = scmp.ne.s32.totalorder %s98, %s100
      %p107 = scmp.eq.s32.totalorder %s27, 3
      %p108 = por %p106, %p107
      %p109 = scmp.ne.s32.totalorder %s100, %s101
      %p110 = scmp.eq.s32.totalorder %s27, 0
      %p111 = por %p109, %p110
      %p112 = scmp.ne.s32.totalorder %s100, %s101
      %p113 = scmp.eq.s32.totalorder %s28, 3
      %p114 = por %p112, %p113
      %p116 = scmp.ne.s32.totalorder %s101, %s115
      %p117 = scmp.eq.s32.totalorder %s28, 0
      %p118 = por %p116, %p117
      %s120 = sadd.s32 %s119, 1
      %p123 = scmp.eq.s32.totalorder %s22, 3
      %p124 = scmp.ne.s32.totalorder %s119, %s121
      %p125 = scmp.eq.s32.totalorder %s22, 0
      %p126 = por %p124, %p125
      %p127 = scmp.ne.s32.totalorder %s119, %s121
      %p128 = scmp.eq.s32.totalorder %s27, 3
      %p129 = por %p127, %p128
      %p130 = scmp.ne.s32.totalorder %s121, %s122
      %p131 = scmp.eq.s32.totalorder %s27, 0
      %p132 = por %p130, %p131
      %p133 = scmp.ne.s32.totalorder %s121, %s122
      %p134 = scmp.eq.s32.totalorder %s28, 3
      %p135 = por %p133, %p134
      %p137 = scmp.ne.s32.totalorder %s122, %s136
      %p138 = scmp.eq.s32.totalorder %s28, 0
      %p139 = por %p137, %p138
      %s141 = sadd.s32 %s140, 1
      %p144 = scmp.eq.s32.totalorder %s22, 3
      %p145 = scmp.ne.s32.totalorder %s140, %s142
      %p146 = scmp.eq.s32.totalorder %s22, 0
      %p147 = por %p145, %p146
      %p148 = scmp.ne.s32.totalorder %s140, %s142
      %p149 = scmp.eq.s32.totalorder %s27, 3
      %p150 = por %p148, %p149
      %p151 = scmp.ne.s32.totalorder %s142, %s143
      %p152 = scmp.eq.s32.totalorder %s27, 0
      %p153 = por %p151, %p152
      %p154 = scmp.ne.s32.totalorder %s142, %s143
      %p155 = scmp.eq.s32.totalorder %s28, 3
      %p156 = por %p154, %p155
      %p158 = scmp.ne.s32.totalorder %s143, %s157
      %p159 = scmp.eq.s32.totalorder %s28, 0
      %p160 = por %p158, %p159
      %s162 = sadd.s32 %s161, 1
      %p165 = scmp.eq.s32.totalorder %s22, 3
      %p166 = scmp.ne.s32.totalorder %s161, %s163
      %p167 = scmp.eq.s32.totalorder %s22, 0
      %p168 = por %p166, %p167
      %p169 = scmp.ne.s32.totalorder %s161, %s163
      %p170 = scmp.eq.s32.totalorder %s27, 3
      %p171 = por %p169, %p170
      %p172 = scmp.ne.s32.totalorder %s163, %s164
      %p173 = scmp.eq.s32.totalorder %s27, 0
      %p174 = por %p172, %p173
      %p175 = scmp.ne.s32.totalorder %s163, %s164
      %p176 = scmp.eq.s32.totalorder %s28, 3
      %p177 = por %p175, %p176
      %p179 = scmp.ne.s32.totalorder %s164, %s178
      %p180 = scmp.eq.s32.totalorder %s28, 0
      %p181 = por %p179, %p180
      %s183 = sadd.s32 %s182, 1
      %p186 = scmp.eq.s32.totalorder %s22, 3
      %p187 = scmp.ne.s32.totalorder %s182, %s184
      %p188 = scmp.eq.s32.totalorder %s22, 0
      %p189 = por %p187, %p188
      %p190 = scmp.ne.s32.totalorder %s182, %s184
      %p191 = scmp.eq.s32.totalorder %s27, 3
      %p192 = por %p190, %p191
      %p193 = scmp.ne.s32.totalorder %s184, %s185
      %p194 = scmp.eq.s32.totalorder %s27, 0
      %p195 = por %p193, %p194
      %p196 = scmp.ne.s32.totalorder %s184, %s185
      %p197 = scmp.eq.s32.totalorder %s28, 3
      %p198 = por %p196, %p197
      %p200 = scmp.ne.s32.totalorder %s185, %s199
      %p201 = scmp.eq.s32.totalorder %s28, 0
      %p202 = por %p200, %p201
      %s204 = sadd.s32 %s203, 1
      %p207 = scmp.eq.s32.totalorder %s22, 3
      %p208 = scmp.ne.s32.totalorder %s203, %s205
      %p209 = scmp.eq.s32.totalorder %s22, 0
      %p210 = por %p208, %p209
      %p211 = scmp.ne.s32.totalorder %s203, %s205
      %p212 = scmp.eq.s32.totalorder %s27, 3
      %p213 = por %p211, %p212
      %p214 = scmp.ne.s32.totalorder %s205, %s206
      %p215 = scmp.eq.s32.totalorder %s27, 0
      %p216 = por %p214, %p215
      %p217 = scmp.ne.s32.totalorder %s205, %s206
      %p218 = scmp.eq.s32.totalorder %s28, 3
      %p219 = por %p217, %p218
      %p221 = scmp.ne.s32.totalorder %s206, %s220
      %p222 = scmp.eq.s32.totalorder %s28, 0
      %p223 = por %p221, %p222
      %s225 = sadd.s32 %s224, 1
      %p228 = scmp.eq.s32.totalorder %s22, 3
      %p229 = scmp.ne.s32.totalorder %s224, %s226
      %p230 = scmp.eq.s32.totalorder %s22, 0
      %p231 = por %p229, %p230
      %p232 = scmp.ne.s32.totalorder %s224, %s226
      %p233 = scmp.eq.s32.totalorder %s27, 3
      %p234 = por %p232, %p233
      %p235 = scmp.ne.s32.totalorder %s226, %s227
      %p236 = scmp.eq.s32.totalorder %s27, 0
      %p237 = por %p235, %p236
      %p238 = scmp.ne.s32.totalorder %s226, %s227
      %p239 = scmp.eq.s32.totalorder %s28, 3
      %p240 = por %p238, %p239
      %p242 = scmp.ne.s32.totalorder %s227, %s241
      %p243 = scmp.eq.s32.totalorder %s28, 0
      %p244 = por %p242, %p243
      %s246 = sadd.s32 %s245, 1
      %p249 = scmp.eq.s32.totalorder %s22, 3
      %p250 = scmp.ne.s32.totalorder %s245, %s247
      %p251 = scmp.eq.s32.totalorder %s22, 0
      %p252 = por %p250, %p251
      %p253 = scmp.ne.s32.totalorder %s245, %s247
      %p254 = scmp.eq.s32.totalorder %s27, 3
      %p255 = por %p253, %p254
      %p256 = scmp.ne.s32.totalorder %s247, %s248
      %p257 = scmp.eq.s32.totalorder %s27, 0
      %p258 = por %p256, %p257
      %p259 = scmp.ne.s32.totalorder %s247, %s248
      %p260 = scmp.eq.s32.totalorder %s28, 3
      %p261 = por %p259, %p260
      %p263 = scmp.ne.s32.totalorder %s248, %s262
      %p264 = scmp.eq.s32.totalorder %s28, 0
      %p265 = por %p263, %p264
      %s266 = ssub.s32 %s29, %s41
      %s267 = ssub.s32 %s30, %s37
      %s268 = sor.u32 %s266, %s267
      %p269 = scmp.eq.s32.totalorder %s268, 0
      %s271 = sadd.s32 %s270, 1
      %s272 = scalar_select %p269, %s270, %s271
      %p275 = pneg %p269
      %p276 = scmp.eq.s32.totalorder %s22, 3
      %p277 = por %p275, %p276
      %p278 = scmp.ne.s32.totalorder %s270, %s273
      %p279 = scmp.eq.s32.totalorder %s22, 0
      %p280 = por %p278, %p279
      %p281 = scmp.ne.s32.totalorder %s270, %s273
      %p282 = scmp.eq.s32.totalorder %s27, 3
      %p283 = por %p281, %p282
      %p284 = scmp.ne.s32.totalorder %s273, %s274
      %p285 = scmp.eq.s32.totalorder %s27, 0
      %p286 = por %p284, %p285
      %p287 = scmp.ne.s32.totalorder %s273, %s274
      %p288 = scmp.eq.s32.totalorder %s28, 3
      %p289 = por %p287, %p288
      %p291 = scmp.ne.s32.totalorder %s274, %s290
      %p292 = scmp.eq.s32.totalorder %s28, 0
      %p293 = por %p291, %p292
      %p294 = scmp.le.s32.totalorder 1, %s22
      %p295 = scmp.lt.s32.totalorder %s22, 5
      %p296 = pnand %p294, %p295
      %p297 = pneg %p296
      // Predicated region
      $region9: #{tpu_custom_call.1} parent=5 // pred_check
        _
      $region10: #{tpu_custom_call.1} parent=5 // pred_check_branch
        %299 = sbr.rel (%p296) target = $region12
      $region11: #{tpu_custom_call.1} parent=5 // pred_region
        %s300 = ssub.s32 %s22, 1
        // Predicated region
        $region13: #{tpu_custom_call.1} parent=11 // pred_check
          %p301 = pneg %p111
        $region14: #{tpu_custom_call.1} parent=11 // pred_check_branch
          %303 = sbr.rel (%p301) target = $region16
        $region15: #{tpu_custom_call.1} parent=11 // pred_region
          %305 = vsyncadd [#allocation3], 0
          %s306 = sshll.u32 %s2, 4
          %s307 = int_to_ptr.hbm [resolvable:$true] %s306
          %s308 = sshll.u32 [#allocation2], 4
          %s309 = int_to_ptr.vmem [resolvable:$true] %s308
          %314 = dma.hbm_to_vmem [thread:$0]  %s307, 256, %s309, [#allocation3], 64, 64, 4
        $region16: #{tpu_custom_call.1} parent=11 // pred_fallthru
          _
        // Predicated region
        $region17: #{tpu_custom_call.1} parent=11 // pred_check
          %p315 = pneg %p132
        $region18: #{tpu_custom_call.1} parent=11 // pred_check_branch
          %317 = sbr.rel (%p315) target = $region20
        $region19: #{tpu_custom_call.1} parent=11 // pred_region
          %319 = vsyncadd [#allocation6], 0
          %s321 = sshll.u32 %s3, 4
          %s322 = int_to_ptr.hbm [resolvable:$true] %s321
          %s323 = sshll.u32 [#allocation5], 4
          %s324 = int_to_ptr.vmem [resolvable:$true] %s323
          %326 = dma.hbm_to_vmem [thread:$0]  %s322, 16, %s324, [#allocation6]
        $region20: #{tpu_custom_call.1} parent=11 // pred_fallthru
          _
        // Predicated region
        $region21: #{tpu_custom_call.1} parent=11 // pred_check
          %p327 = pneg %p153
        $region22: #{tpu_custom_call.1} parent=11 // pred_check_branch
          %329 = sbr.rel (%p327) target = $region24
        $region23: #{tpu_custom_call.1} parent=11 // pred_region
          %331 = vsyncadd [#allocation6], 0
          %s332 = sshll.u32 %s4, 4
          %s333 = int_to_ptr.hbm [resolvable:$true] %s332
          %s334 = sshll.u32 [#allocation7], 4
          %s335 = int_to_ptr.vmem [resolvable:$true] %s334
          %340 = dma.hbm_to_vmem [thread:$0]  %s333, 256, %s335, [#allocation6], 64, 64, 4
        $region24: #{tpu_custom_call.1} parent=11 // pred_fallthru
          _
        // Predicated region
        $region25: #{tpu_custom_call.1} parent=11 // pred_check
          %p341 = pneg %p174
        $region26: #{tpu_custom_call.1} parent=11 // pred_check_branch
          %343 = sbr.rel (%p341) target = $region28
        $region27: #{tpu_custom_call.1} parent=11 // pred_region
          %345 = vsyncadd [#allocation9], 0
          %s347 = sshll.u32 %s5, 4
          %s348 = int_to_ptr.hbm [resolvable:$true] %s347
          %s349 = sshll.u32 [#allocation8], 4
          %s350 = int_to_ptr.vmem [resolvable:$true] %s349
          %352 = dma.hbm_to_vmem [thread:$0]  %s348, 16, %s350, [#allocation9]
        $region28: #{tpu_custom_call.1} parent=11 // pred_fallthru
          _
        // Predicated region
        $region29: #{tpu_custom_call.1} parent=11 // pred_check
          %p353 = pneg %p195
        $region30: #{tpu_custom_call.1} parent=11 // pred_check_branch
          %355 = sbr.rel (%p353) target = $region32
        $region31: #{tpu_custom_call.1} parent=11 // pred_region
          _
        $region32: #{tpu_custom_call.1} parent=11 // pred_fallthru
          _
        // Predicated region
        $region33: #{tpu_custom_call.1} parent=11 // pred_check
          %p356 = pneg %p216
        $region34: #{tpu_custom_call.1} parent=11 // pred_check_branch
          %358 = sbr.rel (%p356) target = $region36
        $region35: #{tpu_custom_call.1} parent=11 // pred_region
          %360 = vsyncadd [#allocation9], 0
          %s361 = sshll.u32 %s7, 4
          %s362 = int_to_ptr.hbm [resolvable:$true] %s361
          %s363 = sshll.u32 [#allocation10], 4
          %s364 = int_to_ptr.vmem [resolvable:$true] %s363
          %369 = dma.hbm_to_vmem [thread:$0]  %s362, 384, %s364, [#allocation9], 64, 64, 4
        $region36: #{tpu_custom_call.1} parent=11 // pred_fallthru
          _
        // Predicated region
        $region37: #{tpu_custom_call.1} parent=11 // pred_check
          %p370 = pneg %p237
        $region38: #{tpu_custom_call.1} parent=11 // pred_check_branch
          %372 = sbr.rel (%p370) target = $region40
        $region39: #{tpu_custom_call.1} parent=11 // pred_region
          _
        $region40: #{tpu_custom_call.1} parent=11 // pred_fallthru
          _
        // Predicated region
        $region41: #{tpu_custom_call.1} parent=11 // pred_check
          %p373 = pneg %p258
        $region42: #{tpu_custom_call.1} parent=11 // pred_check_branch
          %375 = sbr.rel (%p373) target = $region44
        $region43: #{tpu_custom_call.1} parent=11 // pred_region
          _
        $region44: #{tpu_custom_call.1} parent=11 // pred_fallthru
          _
      $region12: #{tpu_custom_call.1} parent=5 // pred_fallthru
        _
      %p376 = scmp.lt.s32.totalorder %s22, 4
      // Predicated region
      $region45: #{tpu_custom_call.1} parent=5 // pred_check
        %p377 = pneg %p376
      $region46: #{tpu_custom_call.1} parent=5 // pred_check_branch
        %379 = sbr.rel (%p377) target = $region48
      $region47: #{tpu_custom_call.1} parent=5 // pred_region
        // Predicated region
        $region49: #{tpu_custom_call.1} parent=47 // pred_check
          %p380 = pneg %p56
        $region50: #{tpu_custom_call.1} parent=47 // pred_check_branch
          %382 = sbr.rel (%p380) target = $region52
        $region51: #{tpu_custom_call.1} parent=47 // pred_region
          %p383 = scmp.lt.s32.totalorder %s29, 1
          %s384 = scalar_select %p383, %s29, 1
          %p385 = scmp.lt.s32.totalorder %s30, 1
          %s386 = scalar_select %p385, %s30, 1
          %s387 = smul.addr %s384, 2
          %s388 = sadd.s32 %s386, %s387
          %s389 = smul.addr %s388, 8
          %s390 = scalar_lea.vmem %s0, %s389
        $region52: #{tpu_custom_call.1} parent=47 // pred_fallthru
          _
        // Predicated region
        $region53: #{tpu_custom_call.1} parent=47 // pred_check
          %p391 = pneg %p84
        $region54: #{tpu_custom_call.1} parent=47 // pred_check_branch
          %393 = sbr.rel (%p391) target = $region56
        $region55: #{tpu_custom_call.1} parent=47 // pred_region
          %p394 = scmp.lt.s32.totalorder %s29, 1
          %s395 = scalar_select %p394, %s29, 1
          %p396 = scmp.lt.s32.totalorder %s30, 1
          %s397 = scalar_select %p396, %s30, 1
          %s398 = smul.addr %s395, 2
          %s399 = sadd.s32 %s397, %s398
          %s400 = smul.addr %s399, 2
          %s401 = scalar_lea.vmem %s1, %s400
        $region56: #{tpu_custom_call.1} parent=47 // pred_fallthru
          _
      $region48: #{tpu_custom_call.1} parent=5 // pred_fallthru
        _
      %p402 = scmp.le.s32.totalorder 1, %s22
      %p403 = scmp.lt.s32.totalorder %s22, 5
      %p404 = pnand %p402, %p403
      %p405 = pneg %p404
      // Predicated region
      $region57: #{tpu_custom_call.1} parent=5 // pred_check
        _
      $region58: #{tpu_custom_call.1} parent=5 // pred_check_branch
        %407 = sbr.rel (%p404) target = $region60
      $region59: #{tpu_custom_call.1} parent=5 // pred_region
        %s408 = ssub.s32 %s22, 1
        // Predicated region
        $region61: #{tpu_custom_call.1} parent=59 // pred_check
          %p409 = pneg %p111
        $region62: #{tpu_custom_call.1} parent=59 // pred_check_branch
          %411 = sbr.rel (%p409) target = $region64
        $region63: #{tpu_custom_call.1} parent=59 // pred_region
          %413 = dma.done [#allocation3], 256
        $region64: #{tpu_custom_call.1} parent=59 // pred_fallthru
          _
        // Predicated region
        $region65: #{tpu_custom_call.1} parent=59 // pred_check
          %p414 = pneg %p132
        $region66: #{tpu_custom_call.1} parent=59 // pred_check_branch
          %416 = sbr.rel (%p414) target = $region68
        $region67: #{tpu_custom_call.1} parent=59 // pred_region
          %418 = dma.done [#allocation6], 16
        $region68: #{tpu_custom_call.1} parent=59 // pred_fallthru
          _
        // Predicated region
        $region69: #{tpu_custom_call.1} parent=59 // pred_check
          %p419 = pneg %p153
        $region70: #{tpu_custom_call.1} parent=59 // pred_check_branch
          %421 = sbr.rel (%p419) target = $region72
        $region71: #{tpu_custom_call.1} parent=59 // pred_region
          %423 = dma.done [#allocation6], 256
        $region72: #{tpu_custom_call.1} parent=59 // pred_fallthru
          _
        // Predicated region
        $region73: #{tpu_custom_call.1} parent=59 // pred_check
          %p424 = pneg %p174
        $region74: #{tpu_custom_call.1} parent=59 // pred_check_branch
          %426 = sbr.rel (%p424) target = $region76
        $region75: #{tpu_custom_call.1} parent=59 // pred_region
          %428 = dma.done [#allocation9], 16
        $region76: #{tpu_custom_call.1} parent=59 // pred_fallthru
          _
        // Predicated region
        $region77: #{tpu_custom_call.1} parent=59 // pred_check
          %p429 = pneg %p216
        $region78: #{tpu_custom_call.1} parent=59 // pred_check_branch
          %431 = sbr.rel (%p429) target = $region80
        $region79: #{tpu_custom_call.1} parent=59 // pred_region
          %433 = dma.done [#allocation9], 384
        $region80: #{tpu_custom_call.1} parent=59 // pred_fallthru
          _
        %p434 = scmp.lt.s32.totalorder %s31, 1
        %s435 = scalar_select %p434, %s31, 1
        %p436 = scmp.lt.s32.totalorder %s32, 1
        %s437 = scalar_select %p436, %s32, 1
        %s438 = smul.addr %s435, 2
        %s439 = sadd.s32 %s437, %s438
        %s440 = smul.addr %s439, 8
        %s441 = scalar_lea.vmem %s0, %s440
        %p442 = pneg %p62
        %p443 = pneg %p59
        %p444 = scmp.lt.s32.totalorder %s31, 1
        %s445 = scalar_select %p444, %s31, 1
        %p446 = scmp.lt.s32.totalorder %s32, 1
        %s447 = scalar_select %p446, %s32, 1
        %s448 = smul.addr %s445, 2
        %s449 = sadd.s32 %s447, %s448
        %s450 = smul.addr %s449, 2
        %s451 = scalar_lea.vmem %s1, %s450
        %p452 = pneg %p90
        %p453 = pneg %p87
        %p454 = pneg %p111
        %p455 = pneg %p108
        %p456 = pneg %p132
        %p457 = pneg %p129
        %p458 = pneg %p153
        %p459 = pneg %p150
        %p460 = pneg %p174
        %p461 = pneg %p171
        %p462 = pneg %p195
        %p463 = pneg %p192
        %p464 = pneg %p216
        %p465 = pneg %p213
        %p466 = pneg %p237
        %p467 = pneg %p234
        %p468 = pneg %p258
        %p469 = pneg %p255
        %p470 = pneg %p286
        %p471 = pneg %p283
        %s472 = sand.u32 %s273, 1
        %s473 = scalar_lea.sflag [#allocation4], %s472
        %s474 = sand.u32 %s273, 1
        %s475 = smul.addr %s474, 8
        %s476 = scalar_lea.vmem [#allocation11], %s475
        %p477 = scmp.lt.s32.totalorder %s31, 1
        %s478 = scalar_select %p477, %s31, 1
        %p479 = scmp.lt.s32.totalorder %s32, 1
        %s480 = scalar_select %p479, %s32, 1
        %s481 = smul.addr %s478, 2
        %s482 = sadd.s32 %s480, %s481
        %s483 = smul.addr %s482, 8
        %s484 = scalar_lea.vmem %s0, %s483
        %p485 = scmp.lt.s32.totalorder %s31, 1
        %s486 = scalar_select %p485, %s31, 1
        %p487 = scmp.lt.s32.totalorder %s32, 1
        %s488 = scalar_select %p487, %s32, 1
        %s489 = smul.addr %s486, 2
        %s490 = sadd.s32 %s488, %s489
        %s491 = smul.addr %s490, 2
        %s492 = scalar_lea.vmem %s1, %s491
        %v494 = vld [vmem:[%s484] sm:$0xff]
        %vm495 = vcmask 261120
        %v496 = vsel %vm495, %v494, 0.0
        %497 = vadd.xlane.f32.xlu0 %v496
        %v498 = vpop.xlane.xlu0 %497
        %v499 = vrcp.pop 32.0
        %v500 = vmul.f32 32.0, %v499
        %v501 = vsub.f32 1.0, %v500
        %v502 = vmul.f32 %v499, %v501
        %v503 = vadd.f32 %v499, %v502
        %vm504 = vweird.f32 %v499
        %v505 = vsel %vm504, %v499, %v503
        %v506 = vmul.f32 %v498, %v505
        %v507 = vsub.f32 %v494, %v506
        %v508 = vmul.f32 %v507, %v507
        %v509 = vsel %vm495, %v508, 0.0
        %510 = vadd.xlane.f32.xlu0 %v509
        %v511 = vpop.xlane.xlu0 %510
        %v512 = vmul.f32 %v511, %v505
        %v513 = vadd.f32 %v512, 1e-05
        %v514 = vrsqrt.pop %v513
        %v515 = vmul.f32 %v514, %v513
        %v516 = vmul.f32 %v515, %v514
        %v517 = vmul.f32 0.5, %v516
        %v518 = vsub.f32 1.5, %v517
        %v519 = vmul.f32 %v514, %v518
        %vm520 = vweird.f32 %v513
        %vm521 = vweird.f32 %v514
        %vm522 = vmor %vm520, %vm521
        %v523 = vsel %vm522, %v514, %v519
        %v524 = vmul.f32 %v507, %v523
        %v525 = vpack.c.bf16 %v524, %v524
        %v526 = vld [vmem:[#allocation2] sm:$0xf]
        %v527 = vld [vmem:[#allocation2 + $0x4] sm:$0xf]
        %v528 = vld [vmem:[#allocation2 + $0x8] sm:$0xf]
        %v529 = vld [vmem:[#allocation2 + $0xc] sm:$0xf]
        %v530 = vld [vmem:[#allocation5] sm:$0x1]
        %v532 = vperm.slane %v530, 0
        %v538 = vunpack.c.l.b16 %v526
        %v539 = vunpack.c.l.b16 %v527
        %v540 = vunpack.c.l.b16 %v528
        %v541 = vunpack.c.l.b16 %v529
        %v542 = vpack.c.b16 %v539, %v538
        %v543 = vpack.c.b16 %v541, %v540
        %v547 = vsel %vm495, %v525, 0
        %549 = vmatpush.bf16.msra.mxu0 0
        %550 = vmatpush.bf16.msra.mxu0 0
        %551 = vmatpush.bf16.msra.mxu0 0
        %552 = vmatpush.bf16.msra.mxu0 0
        %553 = vmatpush.bf16.msra.mxu0 0
        %554 = vmatpush.bf16.msra.mxu0 0
        %555 = vmatpush.bf16.msra.mxu0 %v543
        %556 = vmatpush.bf16.msra.mxu0 %v542
        %557 = vmatmul.bf16.gmra.mxu0 %v547
        %v558 = vpop.f32.mrf.mxu0
        %v559 = vadd.f32 %v532, %v558
        %v560 = vpop.f32.mrf.mxu0
        %561 = vdwg.mxu0
        %v562 = vld [vmem:[#allocation7] sm:$0xf]
        %v563 = vld [vmem:[#allocation7 + $0x4] sm:$0xf]
        %v564 = vld [vmem:[#allocation7 + $0x8] sm:$0xf]
        %v565 = vld [vmem:[#allocation7 + $0xc] sm:$0xf]
        %v566 = vld [vmem:[#allocation8] sm:$0x1]
        %v568 = vperm.slane %v566, 0
        %v574 = vunpack.c.l.b16 %v562
        %v575 = vunpack.c.l.b16 %v563
        %v576 = vunpack.c.l.b16 %v564
        %v577 = vunpack.c.l.b16 %v565
        %v578 = vpack.c.b16 %v575, %v574
        %v579 = vpack.c.b16 %v577, %v576
        %582 = vmatpush.bf16.msra.mxu0 0
        %583 = vmatpush.bf16.msra.mxu0 0
        %584 = vmatpush.bf16.msra.mxu0 0
        %585 = vmatpush.bf16.msra.mxu0 0
        %586 = vmatpush.bf16.msra.mxu0 0
        %587 = vmatpush.bf16.msra.mxu0 0
        %588 = vmatpush.bf16.msra.mxu0 %v579
        %589 = vmatpush.bf16.msra.mxu0 %v578
        %590 = vmatmul.bf16.gmra.mxu0 %v547
        %v591 = vpop.f32.mrf.mxu0
        %v592 = vadd.f32 %v568, %v591
        %v593 = vpop.f32.mrf.mxu0
        %594 = vdwg.mxu0
        %v595 = vld [vmem:[%s492] sm:$0x3]
        %v596 = vlaneseq
        %v597 = vshrl.u32 %v596, 7
        %vm598 = vcmp.eq.s32.totalorder %v597, 0
        %v599 = vrot.slane %v559, 7
        %v600 = vsel %vm598, 1, 0
        %vm601 = vcmp.eq.s32.totalorder %v600, 1
        %v602 = vperm.slane %v595, 0
        %v603 = vsel %vm601, %v602, %v599
        %vm604 = vcmp.eq.s32.totalorder %v597, 7
        %v605 = vrot.slane %v559, 1
        %v606 = vsel %vm604, 1, 0
        %vm607 = vcmp.eq.s32.totalorder %v606, 1
        %v608 = vperm.slane %v595, 1
        %v609 = vsel %vm607, %v608, %v605
        %v610 = vld [vmem:[%s6] sm:$0x7]
        %v611 = vperm.slane %v610, 0
        %v612 = vmul.f32 %v603, %v611
        %v613 = vperm.slane %v610, 1
        %v614 = vmul.f32 %v559, %v613
        %v615 = vadd.f32 %v612, %v614
        %v616 = vperm.slane %v610, 2
        %v617 = vmul.f32 %v609, %v616
        %v618 = vadd.f32 %v615, %v617
        %v619 = vxor.u32 %v618, 2147483648
        %v620 = vmul.f32 %v619, 1.442695
        %v621 = vpow.pop %v620
        %v622 = vadd.f32 %v621, 1.0
        %v623 = vrcp.pop %v622
        %v624 = vmul.f32 %v622, %v623
        %v625 = vsub.f32 1.0, %v624
        %v626 = vmul.f32 %v623, %v625
        %v627 = vadd.f32 %v623, %v626
        %vm628 = vweird.f32 %v622
        %vm629 = vweird.f32 %v623
        %vm630 = vmor %vm628, %vm629
        %v631 = vsel %vm630, %v623, %v627
        %v632 = vand.u32 2147483647, %v622
        %vm633 = vcmp.eq.f32.partialorder %v632, 8.507059e+37
        %v634 = vand.u32 %v622, 2147483648
        %v635 = vor.u32 1.1754944e-38, %v634
        %v636 = vsel %vm633, %v635, %v631
        %v637 = vmul.f32 1.0, %v636
        %v638 = vmul.f32 %v618, %v637
        %v639 = vpack.c.bf16 %v638, %v638
        %v640 = vld [vmem:[#allocation10] sm:$0xf]
        %v641 = vld [vmem:[#allocation10 + $0x4] sm:$0xf]
        %v642 = vld [vmem:[#allocation10 + $0x8] sm:$0xf]
        %v643 = vld [vmem:[#allocation10 + $0xc] sm:$0xf]
        %v644 = vld [vmem:[#allocation10 + $0x10] sm:$0xf]
        %v645 = vld [vmem:[#allocation10 + $0x14] sm:$0xf]
        %v646 = vld [vmem:[%s8] sm:$0x1]
        %v648 = vperm.slane %v646, 0
        %v656 = vunpack.c.l.b16 %v640
        %v657 = vunpack.c.l.b16 %v641
        %v658 = vunpack.c.l.b16 %v642
        %v659 = vunpack.c.l.b16 %v643
        %v660 = vunpack.c.l.b16 %v644
        %v661 = vunpack.c.l.b16 %v645
        %v662 = vpack.c.b16 %v657, %v656
        %v663 = vpack.c.b16 %v659, %v658
        %v664 = vpack.c.b16 %v661, %v660
        %vm668 = vcmask 392192
        %v670 = vsel %vm668, %v639, 0
        %672 = vmatpush.bf16.msra.mxu0 0
        %673 = vmatpush.bf16.msra.mxu0 0
        %674 = vmatpush.bf16.msra.mxu0 0
        %675 = vmatpush.bf16.msra.mxu0 0
        %676 = vmatpush.bf16.msra.mxu0 0
        %677 = vmatpush.bf16.msra.mxu0 %v664
        %678 = vmatpush.bf16.msra.mxu0 %v663
        %679 = vmatpush.bf16.msra.mxu0 %v662
        %680 = vmatmul.bf16.gmra.mxu0 %v670
        %v681 = vpop.f32.mrf.mxu0
        %v682 = vadd.f32 %v648, %v681
        %v683 = vpop.f32.mrf.mxu0
        %684 = vdwg.mxu0
        %v685 = vmin.f32 %v682, 20.0
        %v686 = vmul.f32 %v685, 1.442695
        %v687 = vpow.pop %v686
        %v688 = vadd.f32 %v687, 2.0
        %v689 = vrcp.pop %v688
        %v690 = vsub.f32 1.0, %v689
        %v691 = vmul.f32 %v638, %v690
        %v692 = vxor.u32 %v592, 2147483648
        %v693 = vmul.f32 %v692, 1.442695
        %v694 = vpow.pop %v693
        %v695 = vadd.f32 %v694, 1.0
        %v696 = vrcp.pop %v695
        %v697 = vmul.f32 %v695, %v696
        %v698 = vsub.f32 1.0, %v697
        %v699 = vmul.f32 %v696, %v698
        %v700 = vadd.f32 %v696, %v699
        %vm701 = vweird.f32 %v695
        %vm702 = vweird.f32 %v696
        %vm703 = vmor %vm701, %vm702
        %v704 = vsel %vm703, %v696, %v700
        %v705 = vand.u32 2147483647, %v695
        %vm706 = vcmp.eq.f32.partialorder %v705, 8.507059e+37
        %v707 = vand.u32 %v695, 2147483648
        %v708 = vor.u32 1.1754944e-38, %v707
        %v709 = vsel %vm706, %v708, %v704
        %v710 = vmul.f32 1.0, %v709
        %v711 = vmul.f32 %v691, %v710
        %v712 = vpack.c.bf16 %v711, %v711
        %v713 = vld [vmem:[%s9] sm:$0xf]
        %v714 = vld [vmem:[%s9 + $0x4] sm:$0xf]
        %v715 = vld [vmem:[%s9 + $0x8] sm:$0xf]
        %v716 = vld [vmem:[%s9 + $0xc] sm:$0xf]
        %v717 = vld [vmem:[%s9 + $0x10] sm:$0xf]
        %v718 = vld [vmem:[%s9 + $0x14] sm:$0xf]
        %v725 = vunpack.c.l.b16 %v713
        %v726 = vunpack.c.l.b16 %v714
        %v727 = vunpack.c.l.b16 %v715
        %v728 = vunpack.c.l.b16 %v716
        %v729 = vunpack.c.l.b16 %v717
        %v730 = vunpack.c.l.b16 %v718
        %v731 = vpack.c.b16 %v726, %v725
        %v732 = vpack.c.b16 %v728, %v727
        %v733 = vpack.c.b16 %v730, %v729
        %v738 = vsel %vm668, %v712, 0
        %740 = vmatpush.bf16.msra.mxu0 0
        %741 = vmatpush.bf16.msra.mxu0 0
        %742 = vmatpush.bf16.msra.mxu0 0
        %743 = vmatpush.bf16.msra.mxu0 0
        %744 = vmatpush.bf16.msra.mxu0 0
        %745 = vmatpush.bf16.msra.mxu0 %v733
        %746 = vmatpush.bf16.msra.mxu0 %v732
        %747 = vmatpush.bf16.msra.mxu0 %v731
        %748 = vmatmul.bf16.gmra.mxu0 %v738
        %v749 = vpop.f32.mrf.mxu0
        %v750 = vadd.f32 %v494, %v749
        %v751 = vpop.f32.mrf.mxu0
        %752 = vdwg.mxu0
        %753 = vst.msk [vmem:[%s476] sm:$0xff] %vm495, %v750
        %s754 = sand.u32 %s273, 1
        %s755 = scalar_lea.sflag [#allocation4], %s754
        %s756 = sand.u32 %s273, 1
        %s757 = smul.addr %s756, 8
        %s758 = scalar_lea.vmem [#allocation11], %s757
        // Predicated region
        $region81: #{tpu_custom_call.1} parent=59 // pred_check
          %p759 = pneg %p283
        $region82: #{tpu_custom_call.1} parent=59 // pred_check_branch
          %761 = sbr.rel (%p759) target = $region84
        $region83: #{tpu_custom_call.1} parent=59 // pred_region
          %763 = vsyncadd %s755, 0
          %s764 = smul.addr %s31, 2
          %s765 = sadd.s32 %s32, %s764
          %s766 = smul.addr %s765, 8
          %s767 = scalar_lea.hbm %s10, %s766
          %s769 = sshll.u32 %s758, 4
          %s770 = int_to_ptr.vmem [resolvable:$true] %s769
          %s771 = sshll.u32 %s767, 4
          %s772 = int_to_ptr.hbm [resolvable:$true] %s771
          %774 = dma.vmem_to_hbm [thread:$0]  %s770, 128, %s772, %s755
        $region84: #{tpu_custom_call.1} parent=59 // pred_fallthru
          _
      $region60: #{tpu_custom_call.1} parent=5 // pred_fallthru
        _
      %p775 = scmp.le.s32.totalorder 2, %s22
      // Predicated region
      $region85: #{tpu_custom_call.1} parent=5 // pred_check
        %p776 = pneg %p775
      $region86: #{tpu_custom_call.1} parent=5 // pred_check_branch
        %778 = sbr.rel (%p776) target = $region88
      $region87: #{tpu_custom_call.1} parent=5 // pred_region
        %s779 = ssub.s32 %s22, 2
        // Predicated region
        $region89: #{tpu_custom_call.1} parent=87 // pred_check
          %p780 = pneg %p289
        $region90: #{tpu_custom_call.1} parent=87 // pred_check_branch
          %782 = sbr.rel (%p780) target = $region92
        $region91: #{tpu_custom_call.1} parent=87 // pred_region
          %s783 = sand.u32 %s274, 1
          %s784 = scalar_lea.sflag [#allocation4], %s783
          %s785 = sand.u32 %s274, 1
          %s786 = smul.addr %s785, 8
          %s787 = scalar_lea.vmem [#allocation11], %s786
          %789 = dma.done %s784, 128
        $region92: #{tpu_custom_call.1} parent=87 // pred_fallthru
          _
      $region88: #{tpu_custom_call.1} parent=5 // pred_fallthru
        _
    $region6: #{tpu_custom_call.1} parent=1 // loop_footer
      %s26 = sadd.s32 1, %s22
    $region7: #{tpu_custom_call.1} parent=1 // loop_footer_branch
      %21 = sbr.rel target = $region3
    $region8: #{tpu_custom_call.1} parent=1 // loop_exit
      _
    %790 = vsyncpa [#allocation3], 1
    %s791 = scalar_lea.sflag [#allocation3], 1
    %792 = vsyncpa %s791, 1
    %793 = vsyncpa [#allocation6], 1
    %794 = vsyncpa [#allocation9], 1
    %795 = vsyncpa [#allocation4], 1
    %s796 = scalar_lea.sflag [#allocation4], 1
    %797 = vsyncpa %s796, 1

</llo_original>
